<compile_context>
chip_gen: v7x
topology: tpu7x:2x2x1
jax: 0.10.0
libtpu: 0.0.40
codegen_flags: <defaults>
</compile_context>

<pallas_src>
import jax
import jax.numpy as jnp
from jax.experimental import pallas as pl
from jax.experimental.pallas import tpu as pltpu

_DIMS = [(12, 25), (25, 30), (30, 15), (15, 3)]   # (fan_in, fan_out) per layer
_IN_PAD = [12, 32, 32, 16]                        # padded contraction dims
_OUT_PAD = [32, 32, 16, 8]                        # padded output (sublane) dims
_MAX_TILE = 2048                                  # lanes of batch per grid step


def _round_up(n, m):
    return ((n + m - 1) // m) * m


def _choose_tile(batch, max_tile=_MAX_TILE):
    """Batch tile (lane axis): multiple of 128, >=2 grid steps when B > 128,
    capped at max_tile to amortize per-step overhead without bloating pad."""
    half = -(-batch // 2)                         # cdiv(B, 2)
    tile = max(128, _round_up(half, 128))
    return min(tile, max_tile)


def _mlp_kernel(x_ref,
                w1_ref, b1_ref,
                w2_ref, b2_ref,
                w3_ref, b3_ref,
                w4_ref, b4_ref,
                o_ref):
    # x_ref: [12, tile_b] bf16, w_i: [out_pad, in_pad] bf16, b_i: [out_pad, 1] f32
    h = jnp.dot(w1_ref[...], x_ref[...], preferred_element_type=jnp.float32)
    h = jnp.maximum(h + b1_ref[...], 0.0).astype(jnp.bfloat16)

    h = jnp.dot(w2_ref[...], h, preferred_element_type=jnp.float32)
    h = jnp.maximum(h + b2_ref[...], 0.0).astype(jnp.bfloat16)

    h = jnp.dot(w3_ref[...], h, preferred_element_type=jnp.float32)
    h = jnp.maximum(h + b3_ref[...], 0.0).astype(jnp.bfloat16)

    h = jnp.dot(w4_ref[...], h, preferred_element_type=jnp.float32)
    h = h + b4_ref[...]                            # [8, tile_b] f32

    o_ref[...] = h[:3, :].astype(o_ref.dtype)      # lane-dense [3, tile_b] store


def _pack_params(params):
    """Transpose weights to [out, in], zero-pad to sublane-multiple dims,
    cast weights to bf16 (MXU operands); keep biases f32 as [out_pad, 1]."""
    packed = []
    for idx, ((fan_in, fan_out), in_pad, out_pad) in enumerate(
            zip(_DIMS, _IN_PAD, _OUT_PAD), start=1):
        w = params[f"w{idx}"]                      # [in, out]
        b = params[f"b{idx}"]                      # [1, out]
        wt = jnp.zeros((out_pad, in_pad), jnp.float32).at[:fan_out, :fan_in].set(w.T)
        bt = jnp.zeros((out_pad, 1), jnp.float32).at[:fan_out, :].set(b.T)
        packed += [wt.astype(jnp.bfloat16), bt]
    return tuple(packed)


@jax.jit
def neural_lander_forward(x, params):
    """x: [B, 12] float32; params: dict of W[in,out] / b[1,out] (PyTorch shapes)."""
    B, D_in = x.shape
    assert D_in == 12

    tile_b = _choose_tile(B)
    pB = _round_up(max(B, tile_b), tile_b)
    grid = (pB // tile_b,)

    # Wrapper-side layout plumbing: pad batch, put batch on the lane axis,
    # feed the MXU bf16 operands.  Padded batch columns are zero -> contribute
    # nothing and are sliced off below.
    xp = jnp.pad(x, ((0, pB - B), (0, 0)))
    xT = xp.T.astype(jnp.bfloat16)                 # [12, pB]

    packed = _pack_params(params)

    x_spec = pl.BlockSpec((12, tile_b), lambda i: (0, i))
    resident = lambda a: pl.BlockSpec(a.shape, lambda i: (0, 0))
    out_spec = pl.BlockSpec((3, tile_b), lambda i: (0, i))

    # Advisory cost: report padded MXU flops, not the logical 12/25/30/15 dims.
    flops = 2 * pB * sum(o * i for o, i in zip(_OUT_PAD, _IN_PAD))
    bytes_accessed = (xT.size * 2 + 3 * pB * 4
                      + sum(int(a.size) * a.dtype.itemsize for a in packed))
    cost = pl.CostEstimate(flops=flops, transcendentals=0,
                           bytes_accessed=bytes_accessed)

    outT = pl.pallas_call(
        _mlp_kernel,
        out_shape=jax.ShapeDtypeStruct((3, pB), jnp.float32),
        grid=grid,
        in_specs=[x_spec] + [resident(a) for a in packed],
        out_specs=out_spec,
        compiler_params=pltpu.CompilerParams(
            dimension_semantics=("parallel",)),
        cost_estimate=cost,
    )(xT, *packed)

    return outT[:, :B].T                           # [B, 3]


def init_params(key):
    """Deterministic init matching the PyTorch layer shapes.

    fc1: 12->25, fc2: 25->30, fc3: 30->15, fc4: 15->3.
    Weights stored as [in, out]; biases as [1, out].
    """
    params = {}
    for i, (fan_in, fan_out) in enumerate(_DIMS, start=1):
        key, kw, kb = jax.random.split(key, 3)
        bound = 1.0 / jnp.sqrt(jnp.float32(fan_in))  # PyTorch default uniform bound
        params[f"w{i}"] = jax.random.uniform(
            kw, (fan_in, fan_out), jnp.float32, -bound, bound)
        params[f"b{i}"] = jax.random.uniform(
            kb, (1, fan_out), jnp.float32, -bound, bound)
    return params


def reference_forward(x, params):
    """Pure-f32 reference (matches the PyTorch module exactly)."""
    h = jnp.maximum(x @ params["w1"] + params["b1"], 0.0)
    h = jnp.maximum(h @ params["w2"] + params["b2"], 0.0)
    h = jnp.maximum(h @ params["w3"] + params["b3"], 0.0)
    return h @ params["w4"] + params["b4"]


def reference_forward_bf16(x, params):
    """Reference mirroring the kernel's bf16-operand / f32-accumulate numerics."""
    h = x.astype(jnp.bfloat16)
    for i in range(1, 5):
        w = params[f"w{i}"].astype(jnp.bfloat16)
        h = jnp.dot(h, w, preferred_element_type=jnp.float32) + params[f"b{i}"]
        if i < 4:
            h = jnp.maximum(h, 0.0).astype(jnp.bfloat16)
    return h


if __name__ == "__main__":
    key = jax.random.PRNGKey(0)
    key, kx = jax.random.split(key)

    # Small-batch path (single 128-lane tile).
    B = 8
    x = jax.random.normal(kx, (B, 12), jnp.float32)
    params = init_params(key)

    out = jax.block_until_ready(neural_lander_forward(x, params))
    assert out.shape == (B, 3), out.shape
    ref_bf = reference_forward_bf16(x, params)
    ref_f32 = reference_forward(x, params)
    assert jnp.allclose(out, ref_bf, atol=1e-4, rtol=1e-4), "mismatch vs bf16 ref"
    assert jnp.allclose(out, ref_f32, atol=1e-1, rtol=1e-1), "mismatch vs f32 ref"

    # Multi-tile batch (2 grid steps, ragged last tile) to exercise the grid path.
    B2 = 1300
    key, kx2 = jax.random.split(key)
    x2 = jax.random.normal(kx2, (B2, 12), jnp.float32)
    out2 = jax.block_until_ready(neural_lander_forward(x2, params))
    assert out2.shape == (B2, 3), out2.shape
    ref2_bf = reference_forward_bf16(x2, params)
    ref2_f32 = reference_forward(x2, params)
    assert jnp.allclose(out2, ref2_bf, atol=1e-4, rtol=1e-4), "mismatch (multi-tile, bf16 ref)"
    assert jnp.allclose(out2, ref2_f32, atol=1e-1, rtol=1e-1), "mismatch (multi-tile, f32 ref)"

    print("KERNEL_OK")
</pallas_src>

<mosaic_0001>
module attributes {stable_mosaic.version = 11 : i64} {
  func.func @_mlp_kernel(%arg0: i32, %arg1: memref<12x128xbf16, #tpu.memory_space<vmem>>, %arg2: memref<32x12xbf16, #tpu.memory_space<vmem>>, %arg3: memref<32x1xf32, #tpu.memory_space<vmem>>, %arg4: memref<32x32xbf16, #tpu.memory_space<vmem>>, %arg5: memref<32x1xf32, #tpu.memory_space<vmem>>, %arg6: memref<16x32xbf16, #tpu.memory_space<vmem>>, %arg7: memref<16x1xf32, #tpu.memory_space<vmem>>, %arg8: memref<8x16xbf16, #tpu.memory_space<vmem>>, %arg9: memref<8x1xf32, #tpu.memory_space<vmem>>, %arg10: memref<3x128xf32, #tpu.memory_space<vmem>>) attributes {dimension_semantics = [#tpu.dimension_semantics<parallel>], iteration_bounds = array<i64: 1>, scalar_prefetch = 0 : i64, scratch_operands = 0 : i64, tpu.core_type = #tpu.core_type<tc>, window_params = [{transform_indices = @transform_0, window_bounds = array<i64: 12, 128>}, {pipeline_mode = #tpu.pipeline_mode<synchronous>, transform_indices = @transform_1, window_bounds = array<i64: 32, 12>}, {pipeline_mode = #tpu.pipeline_mode<synchronous>, transform_indices = @transform_2, window_bounds = array<i64: 32, 1>}, {pipeline_mode = #tpu.pipeline_mode<synchronous>, transform_indices = @transform_3, window_bounds = array<i64: 32, 32>}, {pipeline_mode = #tpu.pipeline_mode<synchronous>, transform_indices = @transform_4, window_bounds = array<i64: 32, 1>}, {pipeline_mode = #tpu.pipeline_mode<synchronous>, transform_indices = @transform_5, window_bounds = array<i64: 16, 32>}, {pipeline_mode = #tpu.pipeline_mode<synchronous>, transform_indices = @transform_6, window_bounds = array<i64: 16, 1>}, {pipeline_mode = #tpu.pipeline_mode<synchronous>, transform_indices = @transform_7, window_bounds = array<i64: 8, 16>}, {pipeline_mode = #tpu.pipeline_mode<synchronous>, transform_indices = @transform_8, window_bounds = array<i64: 8, 1>}, {transform_indices = @transform_9, window_bounds = array<i64: 3, 128>}]} {
    %c0 = arith.constant 0 : index
    %c0_0 = arith.constant 0 : index
    %0 = vector.load %arg2[%c0, %c0_0] : memref<32x12xbf16, #tpu.memory_space<vmem>>, vector<32x12xbf16>
    %c0_1 = arith.constant 0 : index
    %c0_2 = arith.constant 0 : index
    %1 = vector.load %arg1[%c0_1, %c0_2] : memref<12x128xbf16, #tpu.memory_space<vmem>>, vector<12x128xbf16>
    %cst = arith.constant dense<0.000000e+00> : vector<32x128xf32>
    %2 = tpu.matmul %0, %1, %cst {dimension_numbers = #tpu.dot_dimension_numbers<[1], [0], [0], [1], [0, 0, 1, 1], [], []>} : vector<32x12xbf16>, vector<12x128xbf16>, vector<32x128xf32> -> vector<32x128xf32>
    %c0_3 = arith.constant 0 : index
    %c0_4 = arith.constant 0 : index
    %3 = vector.load %arg3[%c0_3, %c0_4] : memref<32x1xf32, #tpu.memory_space<vmem>>, vector<32x1xf32>
    %4 = vector.broadcast %3 : vector<32x1xf32> to vector<32x128xf32>
    %5 = arith.addf %2, %4 : vector<32x128xf32>
    %cst_5 = arith.constant 0.000000e+00 : f32
    %6 = vector.broadcast %cst_5 : f32 to vector<32x128xf32>
    %7 = arith.maximumf %5, %6 : vector<32x128xf32>
    %8 = arith.truncf %7 : vector<32x128xf32> to vector<32x128xbf16>
    %c0_6 = arith.constant 0 : index
    %c0_7 = arith.constant 0 : index
    %9 = vector.load %arg4[%c0_6, %c0_7] : memref<32x32xbf16, #tpu.memory_space<vmem>>, vector<32x32xbf16>
    %cst_8 = arith.constant dense<0.000000e+00> : vector<32x128xf32>
    %10 = tpu.matmul %9, %8, %cst_8 {dimension_numbers = #tpu.dot_dimension_numbers<[1], [0], [0], [1], [0, 0, 1, 1], [], []>} : vector<32x32xbf16>, vector<32x128xbf16>, vector<32x128xf32> -> vector<32x128xf32>
    %c0_9 = arith.constant 0 : index
    %c0_10 = arith.constant 0 : index
    %11 = vector.load %arg5[%c0_9, %c0_10] : memref<32x1xf32, #tpu.memory_space<vmem>>, vector<32x1xf32>
    %12 = vector.broadcast %11 : vector<32x1xf32> to vector<32x128xf32>
    %13 = arith.addf %10, %12 : vector<32x128xf32>
    %cst_11 = arith.constant 0.000000e+00 : f32
    %14 = vector.broadcast %cst_11 : f32 to vector<32x128xf32>
    %15 = arith.maximumf %13, %14 : vector<32x128xf32>
    %16 = arith.truncf %15 : vector<32x128xf32> to vector<32x128xbf16>
    %c0_12 = arith.constant 0 : index
    %c0_13 = arith.constant 0 : index
    %17 = vector.load %arg6[%c0_12, %c0_13] : memref<16x32xbf16, #tpu.memory_space<vmem>>, vector<16x32xbf16>
    %cst_14 = arith.constant dense<0.000000e+00> : vector<16x128xf32>
    %18 = tpu.matmul %17, %16, %cst_14 {dimension_numbers = #tpu.dot_dimension_numbers<[1], [0], [0], [1], [0, 0, 1, 1], [], []>} : vector<16x32xbf16>, vector<32x128xbf16>, vector<16x128xf32> -> vector<16x128xf32>
    %c0_15 = arith.constant 0 : index
    %c0_16 = arith.constant 0 : index
    %19 = vector.load %arg7[%c0_15, %c0_16] : memref<16x1xf32, #tpu.memory_space<vmem>>, vector<16x1xf32>
    %20 = vector.broadcast %19 : vector<16x1xf32> to vector<16x128xf32>
    %21 = arith.addf %18, %20 : vector<16x128xf32>
    %cst_17 = arith.constant 0.000000e+00 : f32
    %22 = vector.broadcast %cst_17 : f32 to vector<16x128xf32>
    %23 = arith.maximumf %21, %22 : vector<16x128xf32>
    %24 = arith.truncf %23 : vector<16x128xf32> to vector<16x128xbf16>
    %c0_18 = arith.constant 0 : index
    %c0_19 = arith.constant 0 : index
    %25 = vector.load %arg8[%c0_18, %c0_19] : memref<8x16xbf16, #tpu.memory_space<vmem>>, vector<8x16xbf16>
    %cst_20 = arith.constant dense<0.000000e+00> : vector<8x128xf32>
    %26 = tpu.matmul %25, %24, %cst_20 {dimension_numbers = #tpu.dot_dimension_numbers<[1], [0], [0], [1], [0, 0, 1, 1], [], []>} : vector<8x16xbf16>, vector<16x128xbf16>, vector<8x128xf32> -> vector<8x128xf32>
    %c0_21 = arith.constant 0 : index
    %c0_22 = arith.constant 0 : index
    %27 = vector.load %arg9[%c0_21, %c0_22] : memref<8x1xf32, #tpu.memory_space<vmem>>, vector<8x1xf32>
    %28 = vector.broadcast %27 : vector<8x1xf32> to vector<8x128xf32>
    %29 = arith.addf %26, %28 : vector<8x128xf32>
    %30 = vector.extract_strided_slice %29 {offsets = [0, 0], sizes = [3, 128], strides = [1, 1]} : vector<8x128xf32> to vector<3x128xf32>
    %c0_23 = arith.constant 0 : index
    %c0_24 = arith.constant 0 : index
    %31 = vector.load %arg10[%c0_23, %c0_24] : memref<3x128xf32, #tpu.memory_space<vmem>>, vector<3x128xf32>
    tpu.vector_store %arg10[%c0_23, %c0_24], %30 {strides = array<i32>} : memref<3x128xf32, #tpu.memory_space<vmem>>, vector<3x128xf32>,
    return
  }
  func.func @transform_0(%arg0: i32) -> (i32, i32) {
    %c0_i32 = arith.constant 0 : i32
    %c0_i32_0 = arith.constant 0 : i32
    return %c0_i32, %arg0 : i32, i32
  }
  func.func @transform_1(%arg0: i32) -> (i32, i32) {
    %c0_i32 = arith.constant 0 : i32
    %c0_i32_0 = arith.constant 0 : i32
    %c0_i32_1 = arith.constant 0 : i32
    return %c0_i32, %c0_i32_0 : i32, i32
  }
  func.func @transform_2(%arg0: i32) -> (i32, i32) {
    %c0_i32 = arith.constant 0 : i32
    %c0_i32_0 = arith.constant 0 : i32
    %c0_i32_1 = arith.constant 0 : i32
    return %c0_i32, %c0_i32_0 : i32, i32
  }
  func.func @transform_3(%arg0: i32) -> (i32, i32) {
    %c0_i32 = arith.constant 0 : i32
    %c0_i32_0 = arith.constant 0 : i32
    %c0_i32_1 = arith.constant 0 : i32
    return %c0_i32, %c0_i32_0 : i32, i32
  }
  func.func @transform_4(%arg0: i32) -> (i32, i32) {
    %c0_i32 = arith.constant 0 : i32
    %c0_i32_0 = arith.constant 0 : i32
    %c0_i32_1 = arith.constant 0 : i32
    return %c0_i32, %c0_i32_0 : i32, i32
  }
  func.func @transform_5(%arg0: i32) -> (i32, i32) {
    %c0_i32 = arith.constant 0 : i32
    %c0_i32_0 = arith.constant 0 : i32
    %c0_i32_1 = arith.constant 0 : i32
    return %c0_i32, %c0_i32_0 : i32, i32
  }
  func.func @transform_6(%arg0: i32) -> (i32, i32) {
    %c0_i32 = arith.constant 0 : i32
    %c0_i32_0 = arith.constant 0 : i32
    %c0_i32_1 = arith.constant 0 : i32
    return %c0_i32, %c0_i32_0 : i32, i32
  }
  func.func @transform_7(%arg0: i32) -> (i32, i32) {
    %c0_i32 = arith.constant 0 : i32
    %c0_i32_0 = arith.constant 0 : i32
    %c0_i32_1 = arith.constant 0 : i32
    return %c0_i32, %c0_i32_0 : i32, i32
  }
  func.func @transform_8(%arg0: i32) -> (i32, i32) {
    %c0_i32 = arith.constant 0 : i32
    %c0_i32_0 = arith.constant 0 : i32
    %c0_i32_1 = arith.constant 0 : i32
    return %c0_i32, %c0_i32_0 : i32, i32
  }
  func.func @transform_9(%arg0: i32) -> (i32, i32) {
    %c0_i32 = arith.constant 0 : i32
    %c0_i32_0 = arith.constant 0 : i32
    return %c0_i32, %arg0 : i32, i32
  }
}

</mosaic_0001>

<llo_original>
// kernel: neural_lander_forward.1
$region0: #{neural_lander_forward.1}
  #allocation0 [shape = 'u32[]', space=smem, size = 0x4, offset = 0x4, fixed_abs, tag = 'smem constant byte address 0x4 - core index']
  #allocation1 [shape = 'u32[144,128]{1,0:T(1,128)}', space=vmem, size = 0x12000, scoped, tag = 'internal scratch']
  %s0 = inlined_call_operand.vmem [shape: bf16[12,128], index: 0, kind: input, shape index: {}]
  %s1 = inlined_call_operand.vmem [shape: bf16[32,12], index: 1, kind: input, shape index: {}]
  %s2 = inlined_call_operand.vmem [shape: f32[32,1], index: 2, kind: input, shape index: {}]
  %s3 = inlined_call_operand.vmem [shape: bf16[32,32], index: 3, kind: input, shape index: {}]
  %s4 = inlined_call_operand.vmem [shape: f32[32,1], index: 4, kind: input, shape index: {}]
  %s5 = inlined_call_operand.vmem [shape: bf16[16,32], index: 5, kind: input, shape index: {}]
  %s6 = inlined_call_operand.vmem [shape: f32[16,1], index: 6, kind: input, shape index: {}]
  %s7 = inlined_call_operand.vmem [shape: bf16[8,16], index: 7, kind: input, shape index: {}]
  %s8 = inlined_call_operand.vmem [shape: f32[8,1], index: 8, kind: input, shape index: {}]
  %s9 = inlined_call_operand.vmem [shape: f32[3,128], index: 9, kind: output, shape index: {}]
  %s10 = sld [smem:[#allocation0]]
  $region46: #{neural_lander_forward.1} parent=0
    _
  %s12 = ssub.s32 1, %s10
  %s13 = scalar_select 0, %s12, %s10
  // Predicated region
  $region2: #{neural_lander_forward.1} parent=0 // pred_check
    _
  $region3: #{neural_lander_forward.1} parent=0 // pred_check_branch
    %15 = sbr.rel (0) target = $region5
  $region4: #{neural_lander_forward.1} parent=0 // pred_region
    _
  $region5: #{neural_lander_forward.1} parent=0 // pred_fallthru
    _
  // Predicated region
  $region6: #{neural_lander_forward.1} parent=0 // pred_check
    _
  $region7: #{neural_lander_forward.1} parent=0 // pred_check_branch
    %17 = sbr.rel (0) target = $region9
  $region8: #{neural_lander_forward.1} parent=0 // pred_region
    _
  $region9: #{neural_lander_forward.1} parent=0 // pred_fallthru
    _
  // Predicated region
  $region10: #{neural_lander_forward.1} parent=0 // pred_check
    _
  $region11: #{neural_lander_forward.1} parent=0 // pred_check_branch
    %19 = sbr.rel (0) target = $region13
  $region12: #{neural_lander_forward.1} parent=0 // pred_region
    _
  $region13: #{neural_lander_forward.1} parent=0 // pred_fallthru
    _
  // Predicated region
  $region14: #{neural_lander_forward.1} parent=0 // pred_check
    _
  $region15: #{neural_lander_forward.1} parent=0 // pred_check_branch
    %21 = sbr.rel (0) target = $region17
  $region16: #{neural_lander_forward.1} parent=0 // pred_region
    _
  $region17: #{neural_lander_forward.1} parent=0 // pred_fallthru
    _
  // Predicated region
  $region18: #{neural_lander_forward.1} parent=0 // pred_check
    _
  $region19: #{neural_lander_forward.1} parent=0 // pred_check_branch
    %23 = sbr.rel (0) target = $region21
  $region20: #{neural_lander_forward.1} parent=0 // pred_region
    _
  $region21: #{neural_lander_forward.1} parent=0 // pred_fallthru
    _
  // Predicated region
  $region22: #{neural_lander_forward.1} parent=0 // pred_check
    _
  $region23: #{neural_lander_forward.1} parent=0 // pred_check_branch
    %25 = sbr.rel (0) target = $region25
  $region24: #{neural_lander_forward.1} parent=0 // pred_region
    _
  $region25: #{neural_lander_forward.1} parent=0 // pred_fallthru
    _
  // Predicated region
  $region26: #{neural_lander_forward.1} parent=0 // pred_check
    _
  $region27: #{neural_lander_forward.1} parent=0 // pred_check_branch
    %27 = sbr.rel (0) target = $region29
  $region28: #{neural_lander_forward.1} parent=0 // pred_region
    _
  $region29: #{neural_lander_forward.1} parent=0 // pred_fallthru
    _
  // Predicated region
  $region30: #{neural_lander_forward.1} parent=0 // pred_check
    _
  $region31: #{neural_lander_forward.1} parent=0 // pred_check_branch
    %29 = sbr.rel (0) target = $region33
  $region32: #{neural_lander_forward.1} parent=0 // pred_region
    _
  $region33: #{neural_lander_forward.1} parent=0 // pred_fallthru
    _
  // Predicated region
  $region34: #{neural_lander_forward.1} parent=0 // pred_check
    _
  $region35: #{neural_lander_forward.1} parent=0 // pred_check_branch
    %31 = sbr.rel (0) target = $region37
  $region36: #{neural_lander_forward.1} parent=0 // pred_region
    _
  $region37: #{neural_lander_forward.1} parent=0 // pred_fallthru
    _
  %v33 = vld [vmem:[%s1] sm:$0xf]
  %v34 = vld [vmem:[%s1 + $0x4] sm:$0xf]
  %v35 = vld [vmem:[%s1 + $0x8] sm:$0xf]
  %v36 = vld [vmem:[%s1 + $0xc] sm:$0xf]
  %v37 = vld [vmem:[%s0] sm:$0xf]
  %v38 = vld [vmem:[%s0 + $0x4] sm:$0x3]
  %v39 = vld [vmem:[%s2] sm:$0xff]
  %v40 = vld [vmem:[%s2 + $0x8] sm:$0xff]
  %v41 = vld [vmem:[%s2 + $0x10] sm:$0xff]
  %v42 = vld [vmem:[%s2 + $0x18] sm:$0xff]
  %44 = vset.pattern.permute.xlu0 0
  %45 = vperm.xlu0 %44, %v39
  %v46 = vpop.permute.xlu0 %45
  %49 = vset.pattern.permute.xlu0 0
  %50 = vperm.xlu0 %49, %v40
  %v51 = vpop.permute.xlu0 %50
  %54 = vset.pattern.permute.xlu0 0
  %55 = vperm.xlu0 %54, %v41
  %v56 = vpop.permute.xlu0 %55
  %59 = vset.pattern.permute.xlu0 0
  %60 = vperm.xlu0 %59, %v42
  %v61 = vpop.permute.xlu0 %60
  %v67 = vunpack.c.l.b16 %v33
  %v68 = vunpack.c.l.b16 %v34
  %v69 = vunpack.c.l.b16 %v35
  %v70 = vunpack.c.l.b16 %v36
  %v71 = vpack.c.b16 %v68, %v67
  %v72 = vpack.c.b16 %v70, %v69
  %v75 = vunpack.c.l.b16 %v37
  %v76 = vunpack.c.l.b16 %v38
  %v77 = vpack.c.b16 %v76, %v75
  %vm78 = vcmask 97280
  %v80 = vsel %vm78, %v71, 0
  %v83 = vsel %vm78, %v72, 0
  %vm85 = vcmask 1045504
  %v87 = vsel %vm85, %v77, 0
  %89 = vmatprep.subr.bf16.mxu0 0
  %90 = vmatpush1.bf16.msra.mxu0 %v87
  %91 = vmatprep.subr.bf16.mxu0 0
  %92 = vmatpush1.bf16.msra.mxu0 0
  %93 = vmatprep.subr.bf16.mxu0 0
  %94 = vmatpush1.bf16.msra.mxu0 0
  %95 = vmatprep.subr.bf16.mxu0 0
  %96 = vmatpush1.bf16.msra.mxu0 0
  %97 = vmatprep.subr.bf16.mxu0 0
  %98 = vmatpush1.bf16.msra.mxu0 0
  %99 = vmatprep.subr.bf16.mxu0 0
  %100 = vmatpush1.bf16.msra.mxu0 0
  %101 = vmatprep.subr.bf16.mxu0 0
  %102 = vmatpush1.bf16.msra.mxu0 0
  %103 = vmatprep.subr.bf16.mxu0 0
  %104 = vmatpush1.bf16.msra.mxu0 0
  %105 = vmatprep.subr.bf16.mxu0 0
  %106 = vmatpush1.bf16.msra.mxu0 0
  %107 = vmatprep.subr.bf16.mxu0 0
  %108 = vmatpush1.bf16.msra.mxu0 0
  %109 = vmatprep.subr.bf16.mxu0 0
  %110 = vmatpush1.bf16.msra.mxu0 0
  %111 = vmatprep.subr.bf16.mxu0 0
  %112 = vmatpush1.bf16.msra.mxu0 0
  %113 = vmatprep.subr.bf16.mxu0 0
  %114 = vmatpush1.bf16.msra.mxu0 0
  %115 = vmatprep.subr.bf16.mxu0 0
  %116 = vmatpush1.bf16.msra.mxu0 0
  %117 = vmatprep.subr.bf16.mxu0 0
  %118 = vmatpush1.bf16.msra.mxu0 0
  %119 = vmatprep.subr.bf16.mxu0 0
  %120 = vmatpush1.bf16.msra.mxu0 0
  %121 = vmatprep.mubr.bf16.mxu0 0
  %122 = vmatmul.mubr.bf16.gmra.mrb[0].mxu0 %v80
  %v123 = vpop.f32.mrb[0].mxu0
  %v124 = vadd.f32 %v46, %v123
  %v125 = vpop.f32.mrb[0].mxu0
  %v126 = vpop.f32.mrb[0].mxu0
  %v127 = vadd.f32 %v51, %v126
  %v128 = vpop.f32.mrb[0].mxu0
  %129 = vmatprep.mubr.bf16.mxu0 0
  %130 = vmatmul.mubr.bf16.gmra.mrb[0].mxu0 %v83
  %v131 = vpop.f32.mrb[0].mxu0
  %v132 = vadd.f32 %v56, %v131
  %v133 = vpop.f32.mrb[0].mxu0
  %v134 = vpop.f32.mrb[0].mxu0
  %v135 = vadd.f32 %v61, %v134
  %v136 = vpop.f32.mrb[0].mxu0
  %137 = vdwg.mxu0
  %v138 = vmax.f32 %v124, 0.0
  %v139 = vmax.f32 %v127, 0.0
  %v140 = vmax.f32 %v132, 0.0
  %v141 = vmax.f32 %v135, 0.0
  %v142 = vpack.c.bf16 %v139, %v138
  %v143 = vpack.c.bf16 %v141, %v140
  %v144 = vld [vmem:[%s3] sm:$0xf]
  %v145 = vld [vmem:[%s3 + $0x4] sm:$0xf]
  %v146 = vld [vmem:[%s3 + $0x8] sm:$0xf]
  %v147 = vld [vmem:[%s3 + $0xc] sm:$0xf]
  %v148 = vld [vmem:[%s4] sm:$0xff]
  %v149 = vld [vmem:[%s4 + $0x8] sm:$0xff]
  %v150 = vld [vmem:[%s4 + $0x10] sm:$0xff]
  %v151 = vld [vmem:[%s4 + $0x18] sm:$0xff]
  %153 = vset.pattern.permute.xlu0 0
  %154 = vperm.xlu0 %153, %v148
  %v155 = vpop.permute.xlu0 %154
  %158 = vset.pattern.permute.xlu0 0
  %159 = vperm.xlu0 %158, %v149
  %v160 = vpop.permute.xlu0 %159
  %163 = vset.pattern.permute.xlu0 0
  %164 = vperm.xlu0 %163, %v150
  %v165 = vpop.permute.xlu0 %164
  %168 = vset.pattern.permute.xlu0 0
  %169 = vperm.xlu0 %168, %v151
  %v170 = vpop.permute.xlu0 %169
  %v176 = vunpack.c.l.b16 %v144
  %v177 = vunpack.c.l.b16 %v145
  %v178 = vunpack.c.l.b16 %v146
  %v179 = vunpack.c.l.b16 %v147
  %v180 = vpack.c.b16 %v177, %v176
  %v181 = vpack.c.b16 %v179, %v178
  %vm182 = vcmask 261120
  %v184 = vsel %vm182, %v180, 0
  %v187 = vsel %vm182, %v181, 0
  %189 = vmatprep.subr.bf16.mxu0 0
  %190 = vmatpush1.bf16.msra.mxu0 %v142
  %191 = vmatprep.subr.bf16.mxu0 0
  %192 = vmatpush1.bf16.msra.mxu0 %v143
  %193 = vmatprep.subr.bf16.mxu0 0
  %194 = vmatpush1.bf16.msra.mxu0 0
  %195 = vmatprep.subr.bf16.mxu0 0
  %196 = vmatpush1.bf16.msra.mxu0 0
  %197 = vmatprep.subr.bf16.mxu0 0
  %198 = vmatpush1.bf16.msra.mxu0 0
  %199 = vmatprep.subr.bf16.mxu0 0
  %200 = vmatpush1.bf16.msra.mxu0 0
  %201 = vmatprep.subr.bf16.mxu0 0
  %202 = vmatpush1.bf16.msra.mxu0 0
  %203 = vmatprep.subr.bf16.mxu0 0
  %204 = vmatpush1.bf16.msra.mxu0 0
  %205 = vmatprep.subr.bf16.mxu0 0
  %206 = vmatpush1.bf16.msra.mxu0 0
  %207 = vmatprep.subr.bf16.mxu0 0
  %208 = vmatpush1.bf16.msra.mxu0 0
  %209 = vmatprep.subr.bf16.mxu0 0
  %210 = vmatpush1.bf16.msra.mxu0 0
  %211 = vmatprep.subr.bf16.mxu0 0
  %212 = vmatpush1.bf16.msra.mxu0 0
  %213 = vmatprep.subr.bf16.mxu0 0
  %214 = vmatpush1.bf16.msra.mxu0 0
  %215 = vmatprep.subr.bf16.mxu0 0
  %216 = vmatpush1.bf16.msra.mxu0 0
  %217 = vmatprep.subr.bf16.mxu0 0
  %218 = vmatpush1.bf16.msra.mxu0 0
  %219 = vmatprep.subr.bf16.mxu0 0
  %220 = vmatpush1.bf16.msra.mxu0 0
  %221 = vmatprep.mubr.bf16.mxu0 0
  %222 = vmatmul.mubr.bf16.gmra.mrb[0].mxu0 %v184
  %v223 = vpop.f32.mrb[0].mxu0
  %v224 = vadd.f32 %v155, %v223
  %v225 = vpop.f32.mrb[0].mxu0
  %v226 = vpop.f32.mrb[0].mxu0
  %v227 = vadd.f32 %v160, %v226
  %v228 = vpop.f32.mrb[0].mxu0
  %229 = vmatprep.mubr.bf16.mxu0 0
  %230 = vmatmul.mubr.bf16.gmra.mrb[0].mxu0 %v187
  %v231 = vpop.f32.mrb[0].mxu0
  %v232 = vadd.f32 %v165, %v231
  %v233 = vpop.f32.mrb[0].mxu0
  %v234 = vpop.f32.mrb[0].mxu0
  %v235 = vadd.f32 %v170, %v234
  %v236 = vpop.f32.mrb[0].mxu0
  %237 = vdwg.mxu0
  %v238 = vmax.f32 %v224, 0.0
  %v239 = vmax.f32 %v227, 0.0
  %v240 = vmax.f32 %v232, 0.0
  %v241 = vmax.f32 %v235, 0.0
  %v242 = vpack.c.bf16 %v239, %v238
  %v243 = vpack.c.bf16 %v241, %v240
  %v244 = vld [vmem:[%s5] sm:$0xf]
  %v245 = vld [vmem:[%s5 + $0x4] sm:$0xf]
  %v246 = vld [vmem:[%s6] sm:$0xff]
  %v247 = vld [vmem:[%s6 + $0x8] sm:$0xff]
  %249 = vset.pattern.permute.xlu0 0
  %250 = vperm.xlu0 %249, %v246
  %v251 = vpop.permute.xlu0 %250
  %254 = vset.pattern.permute.xlu0 0
  %255 = vperm.xlu0 %254, %v247
  %v256 = vpop.permute.xlu0 %255
  %v260 = vunpack.c.l.b16 %v244
  %v261 = vunpack.c.l.b16 %v245
  %v262 = vpack.c.b16 %v261, %v260
  %v264 = vsel %vm182, %v262, 0
  %266 = vmatprep.subr.bf16.mxu0 0
  %267 = vmatpush1.bf16.msra.mxu0 %v242
  %268 = vmatprep.subr.bf16.mxu0 0
  %269 = vmatpush1.bf16.msra.mxu0 %v243
  %270 = vmatprep.subr.bf16.mxu0 0
  %271 = vmatpush1.bf16.msra.mxu0 0
  %272 = vmatprep.subr.bf16.mxu0 0
  %273 = vmatpush1.bf16.msra.mxu0 0
  %274 = vmatprep.subr.bf16.mxu0 0
  %275 = vmatpush1.bf16.msra.mxu0 0
  %276 = vmatprep.subr.bf16.mxu0 0
  %277 = vmatpush1.bf16.msra.mxu0 0
  %278 = vmatprep.subr.bf16.mxu0 0
  %279 = vmatpush1.bf16.msra.mxu0 0
  %280 = vmatprep.subr.bf16.mxu0 0
  %281 = vmatpush1.bf16.msra.mxu0 0
  %282 = vmatprep.subr.bf16.mxu0 0
  %283 = vmatpush1.bf16.msra.mxu0 0
  %284 = vmatprep.subr.bf16.mxu0 0
  %285 = vmatpush1.bf16.msra.mxu0 0
  %286 = vmatprep.subr.bf16.mxu0 0
  %287 = vmatpush1.bf16.msra.mxu0 0
  %288 = vmatprep.subr.bf16.mxu0 0
  %289 = vmatpush1.bf16.msra.mxu0 0
  %290 = vmatprep.subr.bf16.mxu0 0
  %291 = vmatpush1.bf16.msra.mxu0 0
  %292 = vmatprep.subr.bf16.mxu0 0
  %293 = vmatpush1.bf16.msra.mxu0 0
  %294 = vmatprep.subr.bf16.mxu0 0
  %295 = vmatpush1.bf16.msra.mxu0 0
  %296 = vmatprep.subr.bf16.mxu0 0
  %297 = vmatpush1.bf16.msra.mxu0 0
  %298 = vmatprep.mubr.bf16.mxu0 0
  %299 = vmatmul.mubr.bf16.gmra.mrb[0].mxu0 %v264
  %v300 = vpop.f32.mrb[0].mxu0
  %v301 = vadd.f32 %v251, %v300
  %v302 = vpop.f32.mrb[0].mxu0
  %v303 = vpop.f32.mrb[0].mxu0
  %v304 = vadd.f32 %v256, %v303
  %v305 = vpop.f32.mrb[0].mxu0
  %306 = vdwg.mxu0
  %v307 = vmax.f32 %v301, 0.0
  %v308 = vmax.f32 %v304, 0.0
  %v309 = vpack.c.bf16 %v308, %v307
  %v310 = vld [vmem:[%s7] sm:$0xf]
  %v311 = vld [vmem:[%s8] sm:$0xff]
  %313 = vset.pattern.permute.xlu0 0
  %314 = vperm.xlu0 %313, %v311
  %v315 = vpop.permute.xlu0 %314
  %vm317 = vcmask 130048
  %v319 = vsel %vm317, %v310, 0
  %321 = vmatprep.subr.bf16.mxu0 0
  %322 = vmatpush1.bf16.msra.mxu0 %v309
  %323 = vmatprep.subr.bf16.mxu0 0
  %324 = vmatpush1.bf16.msra.mxu0 0
  %325 = vmatprep.subr.bf16.mxu0 0
  %326 = vmatpush1.bf16.msra.mxu0 0
  %327 = vmatprep.subr.bf16.mxu0 0
  %328 = vmatpush1.bf16.msra.mxu0 0
  %329 = vmatprep.subr.bf16.mxu0 0
  %330 = vmatpush1.bf16.msra.mxu0 0
  %331 = vmatprep.subr.bf16.mxu0 0
  %332 = vmatpush1.bf16.msra.mxu0 0
  %333 = vmatprep.subr.bf16.mxu0 0
  %334 = vmatpush1.bf16.msra.mxu0 0
  %335 = vmatprep.subr.bf16.mxu0 0
  %336 = vmatpush1.bf16.msra.mxu0 0
  %337 = vmatprep.subr.bf16.mxu0 0
  %338 = vmatpush1.bf16.msra.mxu0 0
  %339 = vmatprep.subr.bf16.mxu0 0
  %340 = vmatpush1.bf16.msra.mxu0 0
  %341 = vmatprep.subr.bf16.mxu0 0
  %342 = vmatpush1.bf16.msra.mxu0 0
  %343 = vmatprep.subr.bf16.mxu0 0
  %344 = vmatpush1.bf16.msra.mxu0 0
  %345 = vmatprep.subr.bf16.mxu0 0
  %346 = vmatpush1.bf16.msra.mxu0 0
  %347 = vmatprep.subr.bf16.mxu0 0
  %348 = vmatpush1.bf16.msra.mxu0 0
  %349 = vmatprep.subr.bf16.mxu0 0
  %350 = vmatpush1.bf16.msra.mxu0 0
  %351 = vmatprep.subr.bf16.mxu0 0
  %352 = vmatpush1.bf16.msra.mxu0 0
  %353 = vmatprep.mubr.bf16.mxu0 0
  %354 = vmatmul.mubr.bf16.gmra.mrb[0].mxu0 %v319
  %v355 = vpop.f32.mrb[0].mxu0
  %v356 = vadd.f32 %v315, %v355
  %v357 = vpop.f32.mrb[0].mxu0
  %v358 = vpop.f32.mrb[0].mxu0
  %v359 = vpop.f32.mrb[0].mxu0
  %360 = vdwg.mxu0
  %361 = vst [vmem:[%s9] sm:$0x7] %v356
  // Predicated region
  $region38: #{neural_lander_forward.1} parent=0 // pred_check
    _
  $region39: #{neural_lander_forward.1} parent=0 // pred_check_branch
    %363 = sbr.rel (0) target = $region41
  $region40: #{neural_lander_forward.1} parent=0 // pred_region
    _
  $region41: #{neural_lander_forward.1} parent=0 // pred_fallthru
    _
  // Predicated region
  $region42: #{neural_lander_forward.1} parent=0 // pred_check
    _
  $region43: #{neural_lander_forward.1} parent=0 // pred_check_branch
    %365 = sbr.rel (0) target = $region45
  $region44: #{neural_lander_forward.1} parent=0 // pred_region
    _
  $region45: #{neural_lander_forward.1} parent=0 // pred_fallthru
    _

</llo_original>
